<compile_context>
chip_gen: v5e
topology: v5e:2x2
jax: 0.10.0
libtpu: 0.0.40
codegen_flags: <defaults>
</compile_context>

<pallas_src>
import functools

import jax
import jax.numpy as jnp
import numpy as np
from jax import lax
from jax.experimental import pallas as pl
from jax.experimental.pallas import tpu as pltpu


def _round_up(x, m):
    return ((x + m - 1) // m) * m


def _time_encode_kernel(pack, time_dim, ts_ref, freq_ref, phase_ref, out_ref):
    # ts_ref:    (TILE, pack)          f32  -- `pack` consecutive timestamps per row
    # freq_ref:  (1, pack*time_dim)    f32  -- basis_freq tiled `pack` times
    # phase_ref: (1, pack*time_dim)    f32  -- phase tiled `pack` times
    # out_ref:   (TILE, pack*time_dim) f32
    ts = ts_ref[...]                                     # (TILE, pack)

    if pack > 1:
        # Lane-expand: ts_exp[r, j*D + d] = ts[r, j]   (exact f32, no matmul).
        # Balanced select tree: pack-1 selects, depth log2(pack), against a
        # single row-invariant lane iota (hoistable by the compiler).
        lanes = out_ref.shape[1]
        lane = lax.broadcasted_iota(jnp.int32, (1, lanes), 1)   # (1, pack*D)

        def expand(lo, hi):
            if hi - lo == 1:
                return ts[:, lo:lo + 1]                 # (TILE, 1) column
            mid = (lo + hi) // 2
            return jnp.where(lane >= mid * time_dim, expand(mid, hi), expand(lo, mid))

        ts_exp = expand(0, pack)                        # (TILE, pack*D)
    else:
        ts_exp = ts                                     # (TILE, 1) broadcasts vs (1, D)

    # VPU multiply-add + cosine on fully lane-dense vregs.
    out_ref[...] = jnp.cos(ts_exp * freq_ref[...] + phase_ref[...])


def _pick_tile_rows(rows, tile_rows_max):
    """Adaptive row tile: cap at tile_rows_max, target >= 4 grid steps,
    multiple of 8 (or full extent for tiny inputs)."""
    tile_rows_max = max(8, _round_up(int(tile_rows_max), 8))
    tile_r = _round_up(pl.cdiv(rows, 4), 8)   # aim for ~4 tiles
    tile_r = max(8, min(tile_r, tile_rows_max))
    if tile_r >= rows:
        tile_r = rows                         # single full-extent tile (any row count legal)
    return tile_r


def time_encode(ts, basis_freq, phase, *, tile_rows=4096):
    """TGAT TimeEncode forward.  ts: (B, L) f32 -> (B, L, D) f32."""
    B, L = ts.shape
    D = int(basis_freq.shape[0])
    N = B * L

    # Row-packing factor for lane-dense stores/compute when D < 128.
    pack = 128 // D if (0 < D < 128 and 128 % D == 0) else 1
    lane_dim = pack * D

    rows = pl.cdiv(N, pack)          # packed row count (minimal: <= pack-1 pad elements)
    n_pad = rows * pack

    ts_flat = ts.reshape(N).astype(jnp.float32)
    if n_pad != N:
        ts_flat = jnp.pad(ts_flat, (0, n_pad - N))
    ts_packed = ts_flat.reshape(rows, pack)

    freq_tiled = jnp.tile(basis_freq.astype(jnp.float32), pack).reshape(1, lane_dim)
    phase_tiled = jnp.tile(phase.astype(jnp.float32), pack).reshape(1, lane_dim)

    tile_r = _pick_tile_rows(rows, tile_rows)
    grid = (pl.cdiv(rows, tile_r),)   # ragged last block is masked by Pallas

    out_packed = pl.pallas_call(
        functools.partial(_time_encode_kernel, pack, D),
        out_shape=jax.ShapeDtypeStruct((rows, lane_dim), jnp.float32),
        grid_spec=pltpu.PrefetchScalarGridSpec(
            num_scalar_prefetch=0,
            grid=grid,
            in_specs=[
                pl.BlockSpec((tile_r, pack), lambda i: (i, 0)),
                pl.BlockSpec((1, lane_dim), lambda i: (0, 0)),
                pl.BlockSpec((1, lane_dim), lambda i: (0, 0)),
            ],
            out_specs=pl.BlockSpec((tile_r, lane_dim), lambda i: (i, 0)),
        ),
        compiler_params=pltpu.CompilerParams(
            dimension_semantics=("parallel",),
            # ~8 MiB live at tile_r=4096 (lane-padded ts block + output, x2 buffers);
            # set explicitly so v5e's 16 MiB scoped default doesn't force smaller tiles.
            vmem_limit_bytes=32 * 1024 * 1024,
        ),
        cost_estimate=pl.CostEstimate(
            flops=2 * N * D,
            transcendentals=N * D,
            bytes_accessed=4 * N * D + 4 * N + 8 * D,
        ),
    )(ts_packed, freq_tiled, phase_tiled)

    # Free row-major reshape back to (rows*pack, D); slice (a copy) only when
    # padding was actually added (at most pack-1 rows).
    out_flat = out_packed.reshape(rows * pack, D)
    if n_pad != N:
        out_flat = out_flat[:N]
    return out_flat.reshape(B, L, D)


if __name__ == "__main__":
    # Small shapes consistent with TimeEncode: batch=2, seq_len=8, expand_dim=32
    B, L, D = 2, 8, 32

    # Deterministic parameter init, mirroring the PyTorch __init__
    basis_freq = jnp.asarray(1.0 / 10 ** np.linspace(0, 9, D), dtype=jnp.float32)
    phase = jnp.zeros((D,), dtype=jnp.float32)

    # Deterministic example input (timestamps)
    key = jax.random.PRNGKey(0)
    ts = jax.random.uniform(key, (B, L), dtype=jnp.float32) * 100.0

    out = time_encode(ts, basis_freq, phase)
    out = jax.block_until_ready(out)

    # Reference check in plain JAX
    ref = jnp.cos(ts[:, :, None] * basis_freq[None, None, :] + phase[None, None, :])
    np.testing.assert_allclose(np.asarray(out), np.asarray(ref), rtol=1e-5, atol=1e-5)

    print("KERNEL_OK")
</pallas_src>

<mosaic_0001>
module attributes {stable_mosaic.version = 11 : i64} {
  func.func @_time_encode_kernel(%arg0: i32, %arg1: memref<4x4xf32, #tpu.memory_space<vmem>>, %arg2: memref<1x128xf32, #tpu.memory_space<vmem>>, %arg3: memref<1x128xf32, #tpu.memory_space<vmem>>, %arg4: memref<4x128xf32, #tpu.memory_space<vmem>>) attributes {dimension_semantics = [#tpu.dimension_semantics<parallel>], iteration_bounds = array<i64: 1>, scalar_prefetch = 0 : i64, scratch_operands = 0 : i64, tpu.core_type = #tpu.core_type<tc>, window_params = [{transform_indices = @transform_0, window_bounds = array<i64: 4, 4>}, {pipeline_mode = #tpu.pipeline_mode<synchronous>, transform_indices = @transform_1, window_bounds = array<i64: 1, 128>}, {pipeline_mode = #tpu.pipeline_mode<synchronous>, transform_indices = @transform_2, window_bounds = array<i64: 1, 128>}, {transform_indices = @transform_3, window_bounds = array<i64: 4, 128>}]} {
    %c0 = arith.constant 0 : index
    %c0_0 = arith.constant 0 : index
    %0 = vector.load %arg1[%c0, %c0_0] : memref<4x4xf32, #tpu.memory_space<vmem>>, vector<4x4xf32>
    %1 = tpu.iota {dimensions = array<i32: 1>} : vector<1x128xi32>
    %c64_i32 = arith.constant 64 : i32
    %2 = vector.broadcast %c64_i32 : i32 to vector<1x128xi32>
    %3 = arith.cmpi sge, %1, %2 : vector<1x128xi32>
    %c96_i32 = arith.constant 96 : i32
    %4 = vector.broadcast %c96_i32 : i32 to vector<1x128xi32>
    %5 = arith.cmpi sge, %1, %4 : vector<1x128xi32>
    %6 = vector.extract_strided_slice %0 {offsets = [0, 3], sizes = [4, 1], strides = [1, 1]} : vector<4x4xf32> to vector<4x1xf32>
    %7 = vector.extract_strided_slice %0 {offsets = [0, 2], sizes = [4, 1], strides = [1, 1]} : vector<4x4xf32> to vector<4x1xf32>
    %8 = vector.shape_cast %5 : vector<1x128xi1> to vector<1x128xi1>
    %9 = vector.broadcast %8 : vector<1x128xi1> to vector<4x128xi1>
    %10 = vector.shape_cast %6 : vector<4x1xf32> to vector<4x1xf32>
    %11 = vector.broadcast %10 : vector<4x1xf32> to vector<4x128xf32>
    %12 = vector.shape_cast %7 : vector<4x1xf32> to vector<4x1xf32>
    %13 = vector.broadcast %12 : vector<4x1xf32> to vector<4x128xf32>
    %14 = arith.select %9, %11, %13 : vector<4x128xi1>, vector<4x128xf32>
    %c32_i32 = arith.constant 32 : i32
    %15 = vector.broadcast %c32_i32 : i32 to vector<1x128xi32>
    %16 = arith.cmpi sge, %1, %15 : vector<1x128xi32>
    %17 = vector.extract_strided_slice %0 {offsets = [0, 1], sizes = [4, 1], strides = [1, 1]} : vector<4x4xf32> to vector<4x1xf32>
    %18 = vector.extract_strided_slice %0 {offsets = [0, 0], sizes = [4, 1], strides = [1, 1]} : vector<4x4xf32> to vector<4x1xf32>
    %19 = vector.shape_cast %16 : vector<1x128xi1> to vector<1x128xi1>
    %20 = vector.broadcast %19 : vector<1x128xi1> to vector<4x128xi1>
    %21 = vector.shape_cast %17 : vector<4x1xf32> to vector<4x1xf32>
    %22 = vector.broadcast %21 : vector<4x1xf32> to vector<4x128xf32>
    %23 = vector.shape_cast %18 : vector<4x1xf32> to vector<4x1xf32>
    %24 = vector.broadcast %23 : vector<4x1xf32> to vector<4x128xf32>
    %25 = arith.select %20, %22, %24 : vector<4x128xi1>, vector<4x128xf32>
    %26 = vector.shape_cast %3 : vector<1x128xi1> to vector<1x128xi1>
    %27 = vector.broadcast %26 : vector<1x128xi1> to vector<4x128xi1>
    %28 = arith.select %27, %14, %25 : vector<4x128xi1>, vector<4x128xf32>
    %c0_1 = arith.constant 0 : index
    %c0_2 = arith.constant 0 : index
    %29 = vector.load %arg2[%c0_1, %c0_2] : memref<1x128xf32, #tpu.memory_space<vmem>>, vector<1x128xf32>
    %30 = vector.broadcast %29 : vector<1x128xf32> to vector<4x128xf32>
    %31 = arith.mulf %28, %30 : vector<4x128xf32>
    %c0_3 = arith.constant 0 : index
    %c0_4 = arith.constant 0 : index
    %32 = vector.load %arg3[%c0_3, %c0_4] : memref<1x128xf32, #tpu.memory_space<vmem>>, vector<1x128xf32>
    %33 = vector.broadcast %32 : vector<1x128xf32> to vector<4x128xf32>
    %34 = arith.addf %31, %33 : vector<4x128xf32>
    %35 = math.cos %34 : vector<4x128xf32>
    %c0_5 = arith.constant 0 : index
    %c0_6 = arith.constant 0 : index
    %36 = vector.load %arg4[%c0_5, %c0_6] : memref<4x128xf32, #tpu.memory_space<vmem>>, vector<4x128xf32>
    tpu.vector_store %arg4[%c0_5, %c0_6], %35 {strides = array<i32>} : memref<4x128xf32, #tpu.memory_space<vmem>>, vector<4x128xf32>,
    return
  }
  func.func @transform_0(%arg0: i32) -> (i32, i32) {
    %c0_i32 = arith.constant 0 : i32
    %c0_i32_0 = arith.constant 0 : i32
    return %arg0, %c0_i32 : i32, i32
  }
  func.func @transform_1(%arg0: i32) -> (i32, i32) {
    %c0_i32 = arith.constant 0 : i32
    %c0_i32_0 = arith.constant 0 : i32
    %c0_i32_1 = arith.constant 0 : i32
    return %c0_i32, %c0_i32_0 : i32, i32
  }
  func.func @transform_2(%arg0: i32) -> (i32, i32) {
    %c0_i32 = arith.constant 0 : i32
    %c0_i32_0 = arith.constant 0 : i32
    %c0_i32_1 = arith.constant 0 : i32
    return %c0_i32, %c0_i32_0 : i32, i32
  }
  func.func @transform_3(%arg0: i32) -> (i32, i32) {
    %c0_i32 = arith.constant 0 : i32
    %c0_i32_0 = arith.constant 0 : i32
    return %arg0, %c0_i32 : i32, i32
  }
}

</mosaic_0001>

<llo_original>
// kernel: tpu_custom_call.1
$region0: #{tpu_custom_call.1}
  #allocation0 [shape = 'u32[]', space=smem, size = 0x4, offset = 0x4, fixed_abs, tag = 'smem constant byte address 0x4 - core index']
  #allocation1 [shape = 'u32[72,128]{1,0:T(1,128)}', space=vmem, size = 0x9000, scoped, tag = 'internal scratch']
  %s0 = inlined_call_operand.hbm [shape: f32[4,4], index: 0, kind: input, shape index: {}]
  %s1 = inlined_call_operand.hbm [shape: f32[1,128], index: 1, kind: input, shape index: {}]
  %s2 = inlined_call_operand.vmem [shape: f32[1,128], index: 2, kind: input, shape index: {}]
  %s3 = inlined_call_operand.hbm [shape: f32[4,128], index: 3, kind: output, shape index: {}]
  %s4 = sld [smem:[#allocation0]]
  $region30: #{tpu_custom_call.1} parent=0
    _
  %s6 = ssub.s32 1, %s4
  %s7 = scalar_select 0, %s6, %s4
  $region1: #{tpu_custom_call.1} parent=0
    #allocation2 [shape = 'u8[2048]{0}', space=vmem, size = 0x800, scoped, tag = 'input window, operand 0, single buffered']
    #allocation3 [shape = 's32[1]{0}', space=sflag, size = 0x4, scoped, tag = 'scoped memory for tpu_custom_call.1']
    #allocation4 [shape = 's32[1]{0}', space=sflag, size = 0x4, scoped, tag = 'scoped memory for tpu_custom_call.1']
    #allocation5 [shape = 'u8[512]{0}', space=vmem, size = 0x400, scoped, tag = 'input window, operand 1, single buffered']
    #allocation6 [shape = 's32[1]{0}', space=sflag, size = 0x4, scoped, tag = 'scoped memory for tpu_custom_call.1']
    #allocation7 [shape = 'u8[2048]{0}', space=vmem, size = 0x800, scoped, tag = 'output window, operand 0, single buffered']
    %8 = vsyncpa [#allocation3], 0
    %9 = vsyncpa [#allocation6], 0
    %10 = vsyncpa [#allocation4], 0
    // Predicated region
    $region2: #{tpu_custom_call.1} parent=1 // pred_check
      _
    $region3: #{tpu_custom_call.1} parent=1 // pred_check_branch
      %12 = sbr.rel (0) target = $region5
    $region4: #{tpu_custom_call.1} parent=1 // pred_region
      %14 = vsyncadd [#allocation3], 0
      %s16 = sshll.u32 %s0, 4
      %s17 = int_to_ptr.hbm [resolvable:$true] %s16
      %s18 = sshll.u32 [#allocation2], 4
      %s19 = int_to_ptr.vmem [resolvable:$true] %s18
      %21 = dma.hbm_to_vmem [thread:$0]  %s17, 64, %s19, [#allocation3]
    $region5: #{tpu_custom_call.1} parent=1 // pred_fallthru
      _
    // Predicated region
    $region6: #{tpu_custom_call.1} parent=1 // pred_check
      _
    $region7: #{tpu_custom_call.1} parent=1 // pred_check_branch
      %23 = sbr.rel (0) target = $region9
    $region8: #{tpu_custom_call.1} parent=1 // pred_region
      %25 = vsyncadd [#allocation6], 0
      %s27 = sshll.u32 %s1, 4
      %s28 = int_to_ptr.hbm [resolvable:$true] %s27
      %s29 = sshll.u32 [#allocation5], 4
      %s30 = int_to_ptr.vmem [resolvable:$true] %s29
      %32 = dma.hbm_to_vmem [thread:$0]  %s28, 16, %s30, [#allocation6]
    $region9: #{tpu_custom_call.1} parent=1 // pred_fallthru
      _
    // Predicated region
    $region10: #{tpu_custom_call.1} parent=1 // pred_check
      _
    $region11: #{tpu_custom_call.1} parent=1 // pred_check_branch
      %34 = sbr.rel (0) target = $region13
    $region12: #{tpu_custom_call.1} parent=1 // pred_region
      _
    $region13: #{tpu_custom_call.1} parent=1 // pred_fallthru
      _
    // Predicated region
    $region14: #{tpu_custom_call.1} parent=1 // pred_check
      _
    $region15: #{tpu_custom_call.1} parent=1 // pred_check_branch
      %36 = sbr.rel (0) target = $region17
    $region16: #{tpu_custom_call.1} parent=1 // pred_region
      %38 = dma.done [#allocation3], 64
    $region17: #{tpu_custom_call.1} parent=1 // pred_fallthru
      _
    // Predicated region
    $region18: #{tpu_custom_call.1} parent=1 // pred_check
      _
    $region19: #{tpu_custom_call.1} parent=1 // pred_check_branch
      %40 = sbr.rel (0) target = $region21
    $region20: #{tpu_custom_call.1} parent=1 // pred_region
      %42 = dma.done [#allocation6], 16
    $region21: #{tpu_custom_call.1} parent=1 // pred_fallthru
      _
    %v43 = vld [vmem:[#allocation2] sm:$0xf]
    %v44 = vlaneseq
    %v45 = vand.u32 %v44, 127
    %vm46 = vcmp.ge.s32.totalorder %v45, 64
    %vm47 = vcmp.ge.s32.totalorder %v45, 96
    %v48 = vsel %vm47, 1, 0
    %vm49 = vcmp.eq.s32.totalorder %v48, 1
    %51 = vset.pattern.permute.xlu0 3
    %52 = vperm.xlu0 %51, %v43
    %v53 = vpop.permute.xlu0 %52
    %55 = vset.pattern.permute.xlu0 2
    %56 = vperm.xlu0 %55, %v43
    %v57 = vpop.permute.xlu0 %56
    %v59 = vsel %vm49, %v53, %v57
    %vm60 = vcmp.ge.s32.totalorder %v45, 32
    %v61 = vsel %vm60, 1, 0
    %vm62 = vcmp.eq.s32.totalorder %v61, 1
    %63 = vset.pattern.permute.xlu0 1
    %64 = vperm.xlu0 %63, %v43
    %v65 = vpop.permute.xlu0 %64
    %67 = vset.pattern.permute.xlu0 0
    %68 = vperm.xlu0 %67, %v43
    %v69 = vpop.permute.xlu0 %68
    %v71 = vsel %vm62, %v65, %v69
    %v72 = vsel %vm46, 1, 0
    %vm73 = vcmp.eq.s32.totalorder %v72, 1
    %v74 = vsel %vm73, %v59, %v71
    %v75 = vld [vmem:[#allocation5] sm:$0x1]
    %v77 = vperm.slane %v75, 0
    %v79 = vmul.f32 %v74, %v77
    %v80 = vld [vmem:[%s2] sm:$0x1]
    %v82 = vperm.slane %v80, 0
    %v84 = vadd.f32 %v79, %v82
    %v85 = vand.u32 2147483647, %v84
    %vm86 = vcmp.le.f32.partialorder %v85, 0.7853982
    %vm87 = vcmp.lt.s32.totalorder %v84, 0
    %v88 = vand.u32 %v84, 2139095040
    %v89 = vshrl.u32 %v88, 23
    %v90 = vsub.s32 %v89, 127
    %v91 = vand.u32 2147483647, %v84
    %v92 = vand.u32 %v91, 8388607
    %v93 = vor.u32 %v92, 8388608
    %v94 = vsub.s32 0, %v93
    %v95 = vadd.s32 %v90, 1
    %vm96 = vcmp.gt.s32.totalorder %v95, 0
    %v97 = vsel %vm96, %v95, 0
    %v98 = vshrl.u32 %v97, 5
    %v99 = vand.u32 %v97, 31
    %v100 = vsub.s32 32, %v99
    %v101 = vshrl.u32 683565275, %v100
    %v102 = vshll.u32 683565275, %v99
    %v103 = vshrl.u32 2475754826, %v100
    %v104 = vor.u32 %v102, %v103
    %v105 = vshll.u32 2475754826, %v99
    %v106 = vshrl.u32 2131351028, %v100
    %v107 = vor.u32 %v105, %v106
    %v108 = vshll.u32 2131351028, %v99
    %v109 = vshrl.u32 2102212464, %v100
    %v110 = vor.u32 %v108, %v109
    %v111 = vshll.u32 2102212464, %v99
    %v112 = vshrl.u32 920167782, %v100
    %v113 = vor.u32 %v111, %v112
    %v114 = vshll.u32 920167782, %v99
    %v115 = vshrl.u32 1326507024, %v100
    %v116 = vor.u32 %v114, %v115
    %vm117 = vcmp.lt.s32.totalorder %v98, 1
    %vm118 = vcmp.lt.s32.totalorder %v98, 2
    %vm119 = vcmp.lt.s32.totalorder %v98, 3
    %vm120 = vcmp.lt.s32.totalorder %v98, 4
    %v121 = vsel %vm117, %v101, %v104
    %v122 = vsel %vm120, %v110, 2102212464
    %v123 = vsel %vm119, %v107, %v122
    %v124 = vsel %vm118, %v121, %v123
    %v125 = vsel %vm117, %v104, %v107
    %v126 = vsel %vm120, %v113, 920167782
    %v127 = vsel %vm119, %v110, %v126
    %v128 = vsel %vm118, %v125, %v127
    %v129 = vsel %vm117, %v107, %v110
    %v130 = vsel %vm120, %v116, 1326507024
    %v131 = vsel %vm119, %v113, %v130
    %v132 = vsel %vm118, %v129, %v131
    %v133 = vshll.u32 %v93, 8
    %v134 = vand.u32 %v133, 65535
    %v135 = vshrl.u32 %v133, 16
    %v136 = vand.u32 %v132, 65535
    %v137 = vshrl.u32 %v132, 16
    %v138 = vmul.u32 %v134, %v136
    %v139 = vmul.u32 %v134, %v137
    %v140 = vmul.u32 %v135, %v136
    %v141 = vmul.u32 %v135, %v137
    %v142 = vshll.u32 %v139, 16
    %v143 = vshrl.u32 %v139, 16
    %v144 = vshll.u32 %v140, 16
    %v145 = vshrl.u32 %v140, 16
    %vm146 = vc.u32 %v138, %v142
    %v147 = vsel %vm146, 1, 0
    %v148 = vadd.s32 %v138, %v142
    %v149 = vadd.s32 %v141, %v147
    %vm150 = vc.u32 %v148, %v144
    %v151 = vsel %vm150, 1, 0
    %v152 = vadd.s32 %v148, %v144
    %v153 = vadd.s32 %v149, %v151
    %v154 = vadd.s32 %v153, %v143
    %v155 = vadd.s32 %v154, %v145
    %v156 = vand.u32 %v133, 65535
    %v157 = vshrl.u32 %v133, 16
    %v158 = vand.u32 %v128, 65535
    %v159 = vshrl.u32 %v128, 16
    %v160 = vmul.u32 %v156, %v158
    %v161 = vmul.u32 %v156, %v159
    %v162 = vmul.u32 %v157, %v158
    %v163 = vmul.u32 %v157, %v159
    %v164 = vshll.u32 %v161, 16
    %v165 = vshrl.u32 %v161, 16
    %v166 = vshll.u32 %v162, 16
    %v167 = vshrl.u32 %v162, 16
    %vm168 = vc.u32 %v160, %v164
    %v169 = vsel %vm168, 1, 0
    %v170 = vadd.s32 %v160, %v164
    %v171 = vadd.s32 %v163, %v169
    %vm172 = vc.u32 %v170, %v166
    %v173 = vsel %vm172, 1, 0
    %v174 = vadd.s32 %v170, %v166
    %v175 = vadd.s32 %v171, %v173
    %v176 = vadd.s32 %v175, %v165
    %v177 = vadd.s32 %v176, %v167
    %v178 = vmul.u32 %v133, %v124
    %v179 = vadd.s32 %v155, %v174
    %vm180 = vc.u32 %v155, %v174
    %v181 = vadd.s32 %v177, 1
    %v182 = vsel %vm180, %v181, %v177
    %v183 = vadd.s32 %v178, %v182
    %v184 = vadd.s32 %v183, 536870912
    %v185 = vshrl.u32 %v184, 30
    %v186 = vshll.u32 %v185, 30
    %v187 = vsub.s32 %v183, %v186
    %vm188 = vcmp.lt.s32.totalorder %v187, 0
    %v189 = vsub.s32 0, %v187
    %v190 = vsel %vm188, %v189, %v187
    %v191 = vclz %v190
    %v192 = vsub.s32 %v191, 2
    %vm193 = vcmp.gt.s32.totalorder 0, %v192
    %v194 = vsel %vm193, 0, %v192
    %v195 = vsub.s32 32, %v194
    %v196 = vshll.u32 %v187, %v194
    %v197 = vshrl.u32 %v179, %v195
    %v198 = vor.u32 %v196, %v197
    %v199 = vsub.s32 4294967266, %v194
    %v200 = vadd.s32 %v199, 127
    %v201 = vshll.u32 %v200, 23
    %v202 = vor.u32 4788187, %v201
    %v203 = vand.u32 2147483647, %v202
    %v205 = vcvt.s32.f32 %v198
    %v206 = vmul.f32 %v205, %v203
    %v207 = vxor.u32 %v206, 2147483648
    %v208 = vsel %vm87, %v207, %v206
    %v209 = vsub.s32 4, %v185
    %v210 = vsel %vm87, %v209, %v185
    %v211 = vsel %vm86, %v84, %v208
    %v212 = vsel %vm86, 0, %v210
    %v213 = vmul.f32 %v211, %v211
    %v214 = vmul.f32 %v213, -0.001358992
    %v215 = vadd.f32 %v214, 0.041655596
    %v216 = vmul.f32 %v213, %v215
    %v217 = vadd.f32 %v216, -0.4999988
    %v218 = vmul.f32 %v213, %v217
    %v219 = vadd.f32 1.0, %v218
    %v220 = vmul.f32 %v211, %v211
    %v221 = vmul.f32 %v220, -0.00019511016
    %v222 = vadd.f32 %v221, 0.008332121
    %v223 = vmul.f32 %v220, %v222
    %v224 = vadd.f32 %v223, -0.16666654
    %v225 = vmul.f32 %v220, %v224
    %v226 = vadd.f32 %v225, 1.0
    %v227 = vmul.f32 %v226, %v211
    %vm228 = vweird.f32 %v84
    %v229 = vand.u32 %v212, 3
    %vm230 = vcmp.lt.s32.totalorder %v229, 2
    %vm231 = vcmp.eq.s32.totalorder %v229, 0
    %v232 = vxor.u32 %v227, 2147483648
    %v233 = vsel %vm231, %v219, %v232
    %vm234 = vcmp.eq.s32.totalorder %v229, 2
    %v235 = vxor.u32 %v219, 2147483648
    %v236 = vsel %vm234, %v235, %v227
    %v237 = vsel %vm230, %v233, %v236
    %v238 = vsel %vm228, nan, %v237
    %239 = vst [vmem:[#allocation7] sm:$0xf] %v238
    // Predicated region
    $region22: #{tpu_custom_call.1} parent=1 // pred_check
      _
    $region23: #{tpu_custom_call.1} parent=1 // pred_check_branch
      %241 = sbr.rel (0) target = $region25
    $region24: #{tpu_custom_call.1} parent=1 // pred_region
      %243 = vsyncadd [#allocation4], 0
      %s245 = sshll.u32 [#allocation7], 4
      %s246 = int_to_ptr.vmem [resolvable:$true] %s245
      %s247 = sshll.u32 %s3, 4
      %s248 = int_to_ptr.hbm [resolvable:$true] %s247
      %250 = dma.vmem_to_hbm [thread:$0]  %s246, 64, %s248, [#allocation4]
    $region25: #{tpu_custom_call.1} parent=1 // pred_fallthru
      _
    // Predicated region
    $region26: #{tpu_custom_call.1} parent=1 // pred_check
      _
    $region27: #{tpu_custom_call.1} parent=1 // pred_check_branch
      %252 = sbr.rel (0) target = $region29
    $region28: #{tpu_custom_call.1} parent=1 // pred_region
      %254 = dma.done [#allocation4], 64
    $region29: #{tpu_custom_call.1} parent=1 // pred_fallthru
      _
    %255 = vsyncpa [#allocation3], 1
    %256 = vsyncpa [#allocation6], 1
    %257 = vsyncpa [#allocation4], 1

</llo_original>
